<compile_context>
chip_gen: v5e
topology: v5e:2x2
jax: 0.10.0
libtpu: 0.0.40
codegen_flags: <defaults>
</compile_context>

<pallas_src>
import math

import numpy as np
import jax
import jax.numpy as jnp
from jax.experimental import pallas as pl
from jax.experimental.pallas import tpu as pltpu


def _interp_matrix(in_size: int, out_size: int) -> np.ndarray:
    """(out_size, in_size) linear-interpolation matrix, align_corners=True."""
    if out_size == 1:
        src = np.zeros((1,), np.float64)
    else:
        src = np.arange(out_size, dtype=np.float64) * ((in_size - 1) / (out_size - 1))
    i0 = np.clip(np.floor(src).astype(np.int64), 0, in_size - 1)
    i1 = np.minimum(i0 + 1, in_size - 1)
    w1 = src - i0
    w0 = 1.0 - w1
    m = np.zeros((out_size, in_size), np.float64)
    m[np.arange(out_size), i0] += w0
    m[np.arange(out_size), i1] += w1
    return m.astype(np.float32)


def _bilinear_kernel(x_ref, ryt_ref, rxt_ref, o_ref):
    # x_ref:   (1, Cb, Hin,  Win )   one (batch, channel-tile) block
    # ryt_ref: (Hin, Hout)           height-interp matrix, transposed, bf16
    # rxt_ref: (Win, Wout)           width-interp matrix,  transposed, bf16
    # o_ref:   (1, Cb, Hout, Wout)
    _, Cb, Hin, Win = x_ref.shape
    _, _, Hout, Wout = o_ref.shape

    x = x_ref[0].astype(jnp.bfloat16)                             # (Cb, Hin, Win)

    # ---- Height pass: single (Cb*Win, Hin) @ (Hin, Hout) MXU matmul ----
    xt = jnp.transpose(x, (0, 2, 1)).reshape(Cb * Win, Hin)       # XLU transpose
    t = jnp.dot(xt, ryt_ref[...],
                preferred_element_type=jnp.float32)               # (Cb*Win, Hout) f32
    t = t.reshape(Cb, Win, Hout).astype(jnp.bfloat16)

    # ---- Width pass: single (Cb*Hout, Win) @ (Win, Wout) MXU matmul ----
    tt = jnp.transpose(t, (0, 2, 1)).reshape(Cb * Hout, Win)      # XLU transpose
    out = jnp.dot(tt, rxt_ref[...],
                  preferred_element_type=jnp.float32)             # (Cb*Hout, Wout)

    # Result rows/lanes already match the output layout: no final transpose.
    o_ref[0] = out.reshape(Cb, Hout, Wout).astype(o_ref.dtype)


def _block_vmem_bytes(cb, H, W, Hout, Wout, io_bytes):
    """Rough per-grid-step VMEM estimate for channel tile cb."""
    blocks = 2 * cb * (H * W + Hout * Wout) * io_bytes            # double-buffered in/out
    # In-kernel temporaries (bf16 copies/transposes + f32 matmul results).
    interm = cb * (H * W * 4 + W * Hout * 6 + Hout * Wout * 4)
    consts = (H * Hout + W * Wout) * 2 * 2                        # bf16 interp mats, 2-buf
    return blocks + interm + consts


def _pick_channel_tile(N, C, H, W, Hout, Wout, io_bytes, budget=20 << 20):
    """Largest divisor of C that fits the VMEM budget; keep >=2 parallel steps."""
    divisors = [d for d in range(1, C + 1) if C % d == 0]
    fitting = [d for d in divisors
               if _block_vmem_bytes(d, H, W, Hout, Wout, io_bytes) <= budget] or [1]
    cb = max(fitting)
    # v7x has 2 TensorCores sharding "parallel" axes: prefer >= 2 grid steps.
    while N * (C // cb) < 2 and cb > 1:
        smaller = [d for d in fitting if d < cb]
        if not smaller:
            break
        cb = max(smaller)
    return cb


def interpolate(x, scale_factor, mode="bilinear"):
    """Pallas equivalent of F.interpolate(x, scale_factor=s, mode=mode, align_corners=True).

    x: (N, C, H, W) floating point.  Only mode='bilinear' is implemented.
    """
    # TODO(synk): 'linear' / 'bicubic' / 'trilinear' align_corners modes are not implemented.
    assert mode == "bilinear", f"unsupported mode: {mode}"
    assert jnp.issubdtype(x.dtype, jnp.floating), x.dtype
    N, C, H, W = x.shape
    Hout = int(math.floor(H * scale_factor))
    Wout = int(math.floor(W * scale_factor))

    # Interp matrices, transposed for right-multiplication, bf16 for the MXU.
    ryt = jnp.asarray(_interp_matrix(H, Hout).T, dtype=jnp.bfloat16)   # (H, Hout)
    rxt = jnp.asarray(_interp_matrix(W, Wout).T, dtype=jnp.bfloat16)   # (W, Wout)

    io_bytes = jnp.dtype(x.dtype).itemsize
    Cb = _pick_channel_tile(N, C, H, W, Hout, Wout, io_bytes)
    num_c_tiles = C // Cb

    # Only raise the scoped-VMEM limit when the tile estimate would exceed the
    # smallest default (16 MiB on v5e); never lower it below the default.
    est = _block_vmem_bytes(Cb, H, W, Hout, Wout, io_bytes)
    vmem_kw = {}
    if est > (16 << 20):
        vmem_kw = dict(vmem_limit_bytes=min(int(est * 1.25) + (2 << 20), 48 << 20))

    return pl.pallas_call(
        _bilinear_kernel,
        out_shape=jax.ShapeDtypeStruct((N, C, Hout, Wout), x.dtype),
        grid_spec=pltpu.PrefetchScalarGridSpec(
            num_scalar_prefetch=0,
            grid=(N, num_c_tiles),
            in_specs=[
                pl.BlockSpec((1, Cb, H, W), lambda n, c: (n, c, 0, 0)),
                pl.BlockSpec((H, Hout), lambda n, c: (0, 0)),
                pl.BlockSpec((W, Wout), lambda n, c: (0, 0)),
            ],
            out_specs=pl.BlockSpec((1, Cb, Hout, Wout), lambda n, c: (n, c, 0, 0)),
        ),
        compiler_params=pltpu.CompilerParams(
            dimension_semantics=("parallel", "parallel"), **vmem_kw),
    )(x, ryt, rxt)


def reference_interpolate(x, scale_factor):
    """Pure-JAX gather reference: PyTorch bilinear, align_corners=True."""
    N, C, H, W = x.shape
    Hout = int(math.floor(H * scale_factor))
    Wout = int(math.floor(W * scale_factor))

    def coords(insz, outsz):
        if outsz == 1:
            return jnp.zeros((1,), jnp.float32)
        return jnp.arange(outsz, dtype=jnp.float32) * ((insz - 1) / (outsz - 1))

    sy = coords(H, Hout)
    sx = coords(W, Wout)
    y0 = jnp.clip(jnp.floor(sy).astype(jnp.int32), 0, H - 1)
    y1 = jnp.minimum(y0 + 1, H - 1)
    wy = (sy - y0.astype(jnp.float32))[None, None, :, None]
    x0 = jnp.clip(jnp.floor(sx).astype(jnp.int32), 0, W - 1)
    x1 = jnp.minimum(x0 + 1, W - 1)
    wx = (sx - x0.astype(jnp.float32))[None, None, None, :]

    def gather(yi, xi):
        return x[:, :, yi, :][:, :, :, xi]

    top = gather(y0, x0) * (1.0 - wx) + gather(y0, x1) * wx
    bot = gather(y1, x0) * (1.0 - wx) + gather(y1, x1) * wx
    return top * (1.0 - wy) + bot * wy


if __name__ == "__main__":
    key = jax.random.PRNGKey(0)
    N, C, H, W = 2, 4, 16, 16
    scale_factor = 2
    x = jax.random.normal(key, (N, C, H, W), jnp.float32)

    out = interpolate(x, scale_factor, mode="bilinear")
    out = jax.block_until_ready(out)

    expected_shape = (N, C, H * scale_factor, W * scale_factor)
    assert out.shape == expected_shape, (out.shape, expected_shape)

    ref = jax.block_until_ready(reference_interpolate(x, scale_factor))
    np.testing.assert_allclose(np.asarray(out), np.asarray(ref), rtol=2e-2, atol=2e-2)

    print("KERNEL_OK")
</pallas_src>

<mosaic_0001>
module attributes {stable_mosaic.version = 11 : i64} {
  func.func @_bilinear_kernel(%arg0: i32, %arg1: i32, %arg2: memref<1x4x16x16xf32, #tpu.memory_space<vmem>>, %arg3: memref<16x32xbf16, #tpu.memory_space<vmem>>, %arg4: memref<16x32xbf16, #tpu.memory_space<vmem>>, %arg5: memref<1x4x32x32xf32, #tpu.memory_space<vmem>>) attributes {dimension_semantics = [#tpu.dimension_semantics<parallel>, #tpu.dimension_semantics<parallel>], iteration_bounds = array<i64: 2, 1>, scalar_prefetch = 0 : i64, scratch_operands = 0 : i64, tpu.core_type = #tpu.core_type<tc>, window_params = [{transform_indices = @transform_0, window_bounds = array<i64: 1, 4, 16, 16>}, {pipeline_mode = #tpu.pipeline_mode<synchronous>, transform_indices = @transform_1, window_bounds = array<i64: 16, 32>}, {pipeline_mode = #tpu.pipeline_mode<synchronous>, transform_indices = @transform_2, window_bounds = array<i64: 16, 32>}, {transform_indices = @transform_3, window_bounds = array<i64: 1, 4, 32, 32>}]} {
    %c0 = arith.constant 0 : index
    %c0_0 = arith.constant 0 : index
    %c0_1 = arith.constant 0 : index
    %c0_2 = arith.constant 0 : index
    %0 = vector.load %arg2[%c0, %c0_0, %c0_1, %c0_2] : memref<1x4x16x16xf32, #tpu.memory_space<vmem>>, vector<1x4x16x16xf32>
    %1 = vector.shape_cast %0 : vector<1x4x16x16xf32> to vector<4x16x16xf32>
    %2 = arith.truncf %1 : vector<4x16x16xf32> to vector<4x16x16xbf16>
    %3 = tpu.transpose %2, [0, 2, 1] : vector<4x16x16xbf16> -> vector<4x16x16xbf16>
    %4 = vector.shape_cast %3 : vector<4x16x16xbf16> to vector<64x16xbf16>
    %c0_3 = arith.constant 0 : index
    %c0_4 = arith.constant 0 : index
    %5 = vector.load %arg3[%c0_3, %c0_4] : memref<16x32xbf16, #tpu.memory_space<vmem>>, vector<16x32xbf16>
    %cst = arith.constant dense<0.000000e+00> : vector<64x32xf32>
    %6 = tpu.matmul %4, %5, %cst {dimension_numbers = #tpu.dot_dimension_numbers<[1], [0], [0], [1], [0, 0, 1, 1], [], []>} : vector<64x16xbf16>, vector<16x32xbf16>, vector<64x32xf32> -> vector<64x32xf32>
    %7 = vector.shape_cast %6 : vector<64x32xf32> to vector<4x16x32xf32>
    %8 = arith.truncf %7 : vector<4x16x32xf32> to vector<4x16x32xbf16>
    %9 = tpu.transpose %8, [0, 2, 1] : vector<4x16x32xbf16> -> vector<4x32x16xbf16>
    %10 = vector.shape_cast %9 : vector<4x32x16xbf16> to vector<128x16xbf16>
    %c0_5 = arith.constant 0 : index
    %c0_6 = arith.constant 0 : index
    %11 = vector.load %arg4[%c0_5, %c0_6] : memref<16x32xbf16, #tpu.memory_space<vmem>>, vector<16x32xbf16>
    %cst_7 = arith.constant dense<0.000000e+00> : vector<128x32xf32>
    %12 = tpu.matmul %10, %11, %cst_7 {dimension_numbers = #tpu.dot_dimension_numbers<[1], [0], [0], [1], [0, 0, 1, 1], [], []>} : vector<128x16xbf16>, vector<16x32xbf16>, vector<128x32xf32> -> vector<128x32xf32>
    %13 = vector.shape_cast %12 : vector<128x32xf32> to vector<4x32x32xf32>
    %c0_8 = arith.constant 0 : index
    %c0_9 = arith.constant 0 : index
    %c0_10 = arith.constant 0 : index
    %c0_11 = arith.constant 0 : index
    %14 = vector.load %arg5[%c0_8, %c0_9, %c0_10, %c0_11] : memref<1x4x32x32xf32, #tpu.memory_space<vmem>>, vector<1x4x32x32xf32>
    %15 = vector.shape_cast %14 : vector<1x4x32x32xf32> to vector<4x32x32xf32>
    %16 = vector.shape_cast %13 : vector<4x32x32xf32> to vector<1x4x32x32xf32>
    tpu.vector_store %arg5[%c0_8, %c0_9, %c0_10, %c0_11], %16 {strides = array<i32>} : memref<1x4x32x32xf32, #tpu.memory_space<vmem>>, vector<1x4x32x32xf32>,
    return
  }
  func.func @transform_0(%arg0: i32, %arg1: i32) -> (i32, i32, i32, i32) {
    %c0_i32 = arith.constant 0 : i32
    %c0_i32_0 = arith.constant 0 : i32
    %c0_i32_1 = arith.constant 0 : i32
    return %arg0, %arg1, %c0_i32, %c0_i32_0 : i32, i32, i32, i32
  }
  func.func @transform_1(%arg0: i32, %arg1: i32) -> (i32, i32) {
    %c0_i32 = arith.constant 0 : i32
    %c0_i32_0 = arith.constant 0 : i32
    %c0_i32_1 = arith.constant 0 : i32
    return %c0_i32, %c0_i32_0 : i32, i32
  }
  func.func @transform_2(%arg0: i32, %arg1: i32) -> (i32, i32) {
    %c0_i32 = arith.constant 0 : i32
    %c0_i32_0 = arith.constant 0 : i32
    %c0_i32_1 = arith.constant 0 : i32
    return %c0_i32, %c0_i32_0 : i32, i32
  }
  func.func @transform_3(%arg0: i32, %arg1: i32) -> (i32, i32, i32, i32) {
    %c0_i32 = arith.constant 0 : i32
    %c0_i32_0 = arith.constant 0 : i32
    %c0_i32_1 = arith.constant 0 : i32
    return %arg0, %arg1, %c0_i32, %c0_i32_0 : i32, i32, i32, i32
  }
}

</mosaic_0001>

<llo_original>
// kernel: tpu_custom_call.1
$region0: #{tpu_custom_call.1}
  #allocation0 [shape = 'u32[]', space=smem, size = 0x4, offset = 0x4, fixed_abs, tag = 'smem constant byte address 0x4 - core index']
  #allocation1 [shape = 'u32[72,128]{1,0:T(1,128)}', space=vmem, size = 0x9000, scoped, tag = 'internal scratch']
  %s0 = inlined_call_operand.hbm [shape: f32[2,4,16,16], index: 0, kind: input, shape index: {}]
  %s1 = inlined_call_operand.hbm [shape: bf16[16,32], index: 1, kind: input, shape index: {}]
  %s2 = inlined_call_operand.hbm [shape: bf16[16,32], index: 2, kind: input, shape index: {}]
  %s3 = inlined_call_operand.hbm [shape: f32[2,4,32,32], index: 3, kind: output, shape index: {}]
  %s4 = sld [smem:[#allocation0]]
  $region57: #{tpu_custom_call.1} parent=0
    _
  %s6 = ssub.s32 1, %s4
  %s7 = scalar_select 0, %s6, %s4
  $region1: #{tpu_custom_call.1} parent=0
    #allocation2 [shape = 'u8[65536]{0}', space=vmem, size = 0x10000, scoped, tag = 'input window, operand 0']
    #allocation3 [shape = 's32[2]{0}', space=sflag, size = 0x8, scoped, tag = 'scoped memory for tpu_custom_call.1']
    #allocation4 [shape = 's32[2]{0}', space=sflag, size = 0x8, scoped, tag = 'scoped memory for tpu_custom_call.1']
    #allocation5 [shape = 'u8[4096]{0}', space=vmem, size = 0x1000, scoped, tag = 'input window, operand 1, single buffered']
    #allocation6 [shape = 's32[1]{0}', space=sflag, size = 0x4, scoped, tag = 'scoped memory for tpu_custom_call.1']
    #allocation7 [shape = 'u8[4096]{0}', space=vmem, size = 0x1000, scoped, tag = 'input window, operand 2, single buffered']
    #allocation8 [shape = 'u8[131072]{0}', space=vmem, size = 0x20000, scoped, tag = 'output window, operand 0']
    %8 = vsyncpa [#allocation3], 0
    %s9 = scalar_lea.sflag [#allocation3], 1
    %10 = vsyncpa %s9, 0
    %11 = vsyncpa [#allocation6], 0
    %12 = vsyncpa [#allocation4], 0
    %s13 = scalar_lea.sflag [#allocation4], 1
    %14 = vsyncpa %s13, 0
    loop: start=0, step=1, limit=4
    $region2: #{tpu_custom_call.1} parent=1 // loop_pre_header
      _
    $region3: #{tpu_custom_call.1} parent=1 // loop_header
      %s16 = sphi 0, %s20
      %p17 = scmp.ge.s32.totalorder %s16, 4
      %s23 = sphi 0, %s35
      %s24 = sphi 0, %s31
      %s25 = sphi 0, %s23
      %s26 = sphi 0, %s24
      %s27 = sphi 0, %s25
      %s28 = sphi 0, %s26
      %s40 = sphi 0, %s42
      %s43 = sphi 0, %s40
      %s44 = sphi 0, %s43
      %s60 = sphi 0, %s44
      %s64 = sphi 0, %s64
      %s66 = sphi 0, %s64
      %s67 = sphi 0, %s66
      %s81 = sphi 0, %s67
      %s85 = sphi 0, %s85
      %s87 = sphi 0, %s85
      %s88 = sphi 0, %s87
      %s102 = sphi 0, %s88
      %s110 = sphi 0, %s112
      %s113 = sphi 0, %s110
      %s114 = sphi 0, %s113
      %s130 = sphi 0, %s114
    $region4: #{tpu_custom_call.1} parent=1 // loop_header_branch
      %19 = sbr.rel (%p17) target = $region8
    $region5: #{tpu_custom_call.1} parent=1 // loop_body
      %s21 = ssub.s32 %s16, 1
      %s22 = ssub.s32 %s16, 2
      %s29 = sadd.s32 1, %s24
      %p30 = scmp.ge.s32.totalorder %s29, 1
      %s31 = scalar_select %p30, 0, %s29
      %s32 = sadd.s32 1, %s23
      %s33 = scalar_select %p30, %s32, %s23
      %p34 = scmp.ge.s32.totalorder %s33, 2
      %s35 = scalar_select %p34, 0, %s33
      %s36 = ssub.s32 %s23, %s35
      %s37 = ssub.s32 %s24, %s31
      %s38 = sor.u32 %s36, %s37
      %p39 = scmp.eq.s32.totalorder %s38, 0
      %s41 = sadd.s32 %s40, 1
      %s42 = scalar_select %p39, %s40, %s41
      %p45 = pneg %p39
      %p46 = scmp.eq.s32.totalorder %s16, 1
      %p47 = por %p45, %p46
      %p48 = scmp.ne.s32.totalorder %s40, %s43
      %p49 = scmp.eq.s32.totalorder %s16, 0
      %p50 = por %p48, %p49
      %p51 = scmp.ne.s32.totalorder %s40, %s43
      %p52 = scmp.eq.s32.totalorder %s21, 1
      %p53 = por %p51, %p52
      %p54 = scmp.ne.s32.totalorder %s43, %s44
      %p55 = scmp.eq.s32.totalorder %s21, 0
      %p56 = por %p54, %p55
      %p57 = scmp.ne.s32.totalorder %s43, %s44
      %p58 = scmp.eq.s32.totalorder %s22, 1
      %p59 = por %p57, %p58
      %p61 = scmp.ne.s32.totalorder %s44, %s60
      %p62 = scmp.eq.s32.totalorder %s22, 0
      %p63 = por %p61, %p62
      %s65 = sadd.s32 %s64, 1
      %p68 = scmp.eq.s32.totalorder %s16, 1
      %p69 = scmp.ne.s32.totalorder %s64, %s66
      %p70 = scmp.eq.s32.totalorder %s16, 0
      %p71 = por %p69, %p70
      %p72 = scmp.ne.s32.totalorder %s64, %s66
      %p73 = scmp.eq.s32.totalorder %s21, 1
      %p74 = por %p72, %p73
      %p75 = scmp.ne.s32.totalorder %s66, %s67
      %p76 = scmp.eq.s32.totalorder %s21, 0
      %p77 = por %p75, %p76
      %p78 = scmp.ne.s32.totalorder %s66, %s67
      %p79 = scmp.eq.s32.totalorder %s22, 1
      %p80 = por %p78, %p79
      %p82 = scmp.ne.s32.totalorder %s67, %s81
      %p83 = scmp.eq.s32.totalorder %s22, 0
      %p84 = por %p82, %p83
      %s86 = sadd.s32 %s85, 1
      %p89 = scmp.eq.s32.totalorder %s16, 1
      %p90 = scmp.ne.s32.totalorder %s85, %s87
      %p91 = scmp.eq.s32.totalorder %s16, 0
      %p92 = por %p90, %p91
      %p93 = scmp.ne.s32.totalorder %s85, %s87
      %p94 = scmp.eq.s32.totalorder %s21, 1
      %p95 = por %p93, %p94
      %p96 = scmp.ne.s32.totalorder %s87, %s88
      %p97 = scmp.eq.s32.totalorder %s21, 0
      %p98 = por %p96, %p97
      %p99 = scmp.ne.s32.totalorder %s87, %s88
      %p100 = scmp.eq.s32.totalorder %s22, 1
      %p101 = por %p99, %p100
      %p103 = scmp.ne.s32.totalorder %s88, %s102
      %p104 = scmp.eq.s32.totalorder %s22, 0
      %p105 = por %p103, %p104
      %s106 = ssub.s32 %s23, %s35
      %s107 = ssub.s32 %s24, %s31
      %s108 = sor.u32 %s106, %s107
      %p109 = scmp.eq.s32.totalorder %s108, 0
      %s111 = sadd.s32 %s110, 1
      %s112 = scalar_select %p109, %s110, %s111
      %p115 = pneg %p109
      %p116 = scmp.eq.s32.totalorder %s16, 1
      %p117 = por %p115, %p116
      %p118 = scmp.ne.s32.totalorder %s110, %s113
      %p119 = scmp.eq.s32.totalorder %s16, 0
      %p120 = por %p118, %p119
      %p121 = scmp.ne.s32.totalorder %s110, %s113
      %p122 = scmp.eq.s32.totalorder %s21, 1
      %p123 = por %p121, %p122
      %p124 = scmp.ne.s32.totalorder %s113, %s114
      %p125 = scmp.eq.s32.totalorder %s21, 0
      %p126 = por %p124, %p125
      %p127 = scmp.ne.s32.totalorder %s113, %s114
      %p128 = scmp.eq.s32.totalorder %s22, 1
      %p129 = por %p127, %p128
      %p131 = scmp.ne.s32.totalorder %s114, %s130
      %p132 = scmp.eq.s32.totalorder %s22, 0
      %p133 = por %p131, %p132
      %p134 = scmp.le.s32.totalorder 1, %s16
      %p135 = scmp.lt.s32.totalorder %s16, 3
      %p136 = pnand %p134, %p135
      %p137 = pneg %p136
      // Predicated region
      $region9: #{tpu_custom_call.1} parent=5 // pred_check
        _
      $region10: #{tpu_custom_call.1} parent=5 // pred_check_branch
        %139 = sbr.rel (%p136) target = $region12
      $region11: #{tpu_custom_call.1} parent=5 // pred_region
        %s140 = ssub.s32 %s16, 1
        // Predicated region
        $region13: #{tpu_custom_call.1} parent=11 // pred_check
          %p141 = pneg %p77
        $region14: #{tpu_custom_call.1} parent=11 // pred_check_branch
          %143 = sbr.rel (%p141) target = $region16
        $region15: #{tpu_custom_call.1} parent=11 // pred_region
          %145 = vsyncadd [#allocation6], 0
          %s146 = sshll.u32 %s1, 4
          %s147 = int_to_ptr.hbm [resolvable:$true] %s146
          %s148 = sshll.u32 [#allocation5], 4
          %s149 = int_to_ptr.vmem [resolvable:$true] %s148
          %154 = dma.hbm_to_vmem [thread:$0]  %s147, 128, %s149, [#allocation6], 64, 64, 4
        $region16: #{tpu_custom_call.1} parent=11 // pred_fallthru
          _
        // Predicated region
        $region17: #{tpu_custom_call.1} parent=11 // pred_check
          %p155 = pneg %p98
        $region18: #{tpu_custom_call.1} parent=11 // pred_check_branch
          %157 = sbr.rel (%p155) target = $region20
        $region19: #{tpu_custom_call.1} parent=11 // pred_region
          %159 = vsyncadd [#allocation6], 0
          %s160 = sshll.u32 %s2, 4
          %s161 = int_to_ptr.hbm [resolvable:$true] %s160
          %s162 = sshll.u32 [#allocation7], 4
          %s163 = int_to_ptr.vmem [resolvable:$true] %s162
          %168 = dma.hbm_to_vmem [thread:$0]  %s161, 128, %s163, [#allocation6], 64, 64, 4
        $region20: #{tpu_custom_call.1} parent=11 // pred_fallthru
          _
      $region12: #{tpu_custom_call.1} parent=5 // pred_fallthru
        _
      %p169 = scmp.lt.s32.totalorder %s16, 2
      // Predicated region
      $region21: #{tpu_custom_call.1} parent=5 // pred_check
        %p170 = pneg %p169
      $region22: #{tpu_custom_call.1} parent=5 // pred_check_branch
        %172 = sbr.rel (%p170) target = $region24
      $region23: #{tpu_custom_call.1} parent=5 // pred_region
        // Predicated region
        $region25: #{tpu_custom_call.1} parent=23 // pred_check
          %p173 = pneg %p50
        $region26: #{tpu_custom_call.1} parent=23 // pred_check_branch
          %175 = sbr.rel (%p173) target = $region28
        $region27: #{tpu_custom_call.1} parent=23 // pred_region
          %s176 = sand.u32 %s40, 1
          %s177 = scalar_lea.sflag [#allocation3], %s176
          %s178 = sand.u32 %s40, 1
          %s179 = smul.addr %s178, 64
          %s180 = scalar_lea.vmem [#allocation2], %s179
          %s181 = smul.u32 4, %s24
          %183 = vsyncadd %s177, 0
          %s184 = smul.addr %s181, 2
          %s185 = smul.addr %s23, 8
          %s186 = sadd.s32 %s184, %s185
          %s187 = smul.addr %s186, 8
          %s188 = scalar_lea.hbm %s0, %s187
          %s189 = sshll.u32 %s188, 4
          %s190 = int_to_ptr.hbm [resolvable:$true] %s189
          %s191 = sshll.u32 %s180, 4
          %s192 = int_to_ptr.vmem [resolvable:$true] %s191
          %197 = dma.hbm_to_vmem [thread:$0]  %s190, 1024, %s192, %s177, 128, 128, 8
        $region28: #{tpu_custom_call.1} parent=23 // pred_fallthru
          _
      $region24: #{tpu_custom_call.1} parent=5 // pred_fallthru
        _
      %p198 = scmp.le.s32.totalorder 1, %s16
      %p199 = scmp.lt.s32.totalorder %s16, 3
      %p200 = pnand %p198, %p199
      %p201 = pneg %p200
      // Predicated region
      $region29: #{tpu_custom_call.1} parent=5 // pred_check
        _
      $region30: #{tpu_custom_call.1} parent=5 // pred_check_branch
        %203 = sbr.rel (%p200) target = $region32
      $region31: #{tpu_custom_call.1} parent=5 // pred_region
        %s204 = ssub.s32 %s16, 1
        %s205 = sand.u32 %s43, 1
        %s206 = scalar_lea.sflag [#allocation3], %s205
        %s207 = sand.u32 %s43, 1
        %s208 = smul.addr %s207, 64
        %s209 = scalar_lea.vmem [#allocation2], %s208
        // Predicated region
        $region33: #{tpu_custom_call.1} parent=31 // pred_check
          %p210 = pneg %p56
        $region34: #{tpu_custom_call.1} parent=31 // pred_check_branch
          %212 = sbr.rel (%p210) target = $region36
        $region35: #{tpu_custom_call.1} parent=31 // pred_region
          %214 = dma.done %s206, 1024
        $region36: #{tpu_custom_call.1} parent=31 // pred_fallthru
          _
        // Predicated region
        $region37: #{tpu_custom_call.1} parent=31 // pred_check
          %p215 = pneg %p77
        $region38: #{tpu_custom_call.1} parent=31 // pred_check_branch
          %217 = sbr.rel (%p215) target = $region40
        $region39: #{tpu_custom_call.1} parent=31 // pred_region
          %219 = dma.done [#allocation6], 128
        $region40: #{tpu_custom_call.1} parent=31 // pred_fallthru
          _
        // Predicated region
        $region41: #{tpu_custom_call.1} parent=31 // pred_check
          %p220 = pneg %p98
        $region42: #{tpu_custom_call.1} parent=31 // pred_check_branch
          %222 = sbr.rel (%p220) target = $region44
        $region43: #{tpu_custom_call.1} parent=31 // pred_region
          %224 = dma.done [#allocation6], 128
        $region44: #{tpu_custom_call.1} parent=31 // pred_fallthru
          _
        %s225 = sand.u32 %s43, 1
        %s226 = scalar_lea.sflag [#allocation3], %s225
        %s227 = sand.u32 %s43, 1
        %s228 = smul.addr %s227, 64
        %s229 = scalar_lea.vmem [#allocation2], %s228
        %p230 = pneg %p56
        %p231 = pneg %p53
        %p232 = pneg %p77
        %p233 = pneg %p74
        %p234 = pneg %p98
        %p235 = pneg %p95
        %p236 = pneg %p126
        %p237 = pneg %p123
        %s238 = sand.u32 %s113, 1
        %s239 = scalar_lea.sflag [#allocation4], %s238
        %s240 = sand.u32 %s113, 1
        %s241 = smul.addr %s240, 128
        %s242 = scalar_lea.vmem [#allocation8], %s241
        %s243 = smul.u32 4, %s26
        %s244 = smul.u32 4, %s26
        %v246 = vld [vmem:[%s209] sm:$0xff]
        %v247 = vld [vmem:[%s209 + $0x8] sm:$0xff]
        %v248 = vld [vmem:[%s209 + $0x10] sm:$0xff]
        %v249 = vld [vmem:[%s209 + $0x18] sm:$0xff]
        %v250 = vld [vmem:[%s209 + $0x20] sm:$0xff]
        %v251 = vld [vmem:[%s209 + $0x28] sm:$0xff]
        %v252 = vld [vmem:[%s209 + $0x30] sm:$0xff]
        %v253 = vld [vmem:[%s209 + $0x38] sm:$0xff]
        %v254 = vpack.c.bf16 %v247, %v246
        %v255 = vpack.c.bf16 %v249, %v248
        %v256 = vpack.c.bf16 %v251, %v250
        %v257 = vpack.c.bf16 %v253, %v252
        %258 = vxpose.xlu0.c.b16.start [1/8] %v254, 128
        %259 = vxpose.xlu0.c.b16.cont [2/8] 0, 128
        %260 = vxpose.xlu0.c.b16.cont [3/8] 0, 128
        %261 = vxpose.xlu0.c.b16.cont [4/8] 0, 128
        %262 = vxpose.xlu0.c.b16.cont [5/8] 0, 128
        %263 = vxpose.xlu0.c.b16.cont [6/8] 0, 128
        %264 = vxpose.xlu0.c.b16.cont [7/8] 0, 128
        %265 = vxpose.xlu0.c.b16.end [8/8] 0, 128
        %v266 = vpop.trf.xlu0
        %v267 = vpop.trf.xlu0
        %v268 = vpop.trf.xlu0
        %v269 = vpop.trf.xlu0
        %v270 = vpop.trf.xlu0
        %v271 = vpop.trf.xlu0
        %v272 = vpop.trf.xlu0
        %v273 = vpop.trf.xlu0
        %274 = vxpose.xlu0.c.b16.start [1/8] %v255, 128
        %275 = vxpose.xlu0.c.b16.cont [2/8] 0, 128
        %276 = vxpose.xlu0.c.b16.cont [3/8] 0, 128
        %277 = vxpose.xlu0.c.b16.cont [4/8] 0, 128
        %278 = vxpose.xlu0.c.b16.cont [5/8] 0, 128
        %279 = vxpose.xlu0.c.b16.cont [6/8] 0, 128
        %280 = vxpose.xlu0.c.b16.cont [7/8] 0, 128
        %281 = vxpose.xlu0.c.b16.end [8/8] 0, 128
        %v282 = vpop.trf.xlu0
        %v283 = vpop.trf.xlu0
        %v284 = vpop.trf.xlu0
        %v285 = vpop.trf.xlu0
        %v286 = vpop.trf.xlu0
        %v287 = vpop.trf.xlu0
        %v288 = vpop.trf.xlu0
        %v289 = vpop.trf.xlu0
        %290 = vxpose.xlu0.c.b16.start [1/8] %v256, 128
        %291 = vxpose.xlu0.c.b16.cont [2/8] 0, 128
        %292 = vxpose.xlu0.c.b16.cont [3/8] 0, 128
        %293 = vxpose.xlu0.c.b16.cont [4/8] 0, 128
        %294 = vxpose.xlu0.c.b16.cont [5/8] 0, 128
        %295 = vxpose.xlu0.c.b16.cont [6/8] 0, 128
        %296 = vxpose.xlu0.c.b16.cont [7/8] 0, 128
        %297 = vxpose.xlu0.c.b16.end [8/8] 0, 128
        %v298 = vpop.trf.xlu0
        %v299 = vpop.trf.xlu0
        %v300 = vpop.trf.xlu0
        %v301 = vpop.trf.xlu0
        %v302 = vpop.trf.xlu0
        %v303 = vpop.trf.xlu0
        %v304 = vpop.trf.xlu0
        %v305 = vpop.trf.xlu0
        %306 = vxpose.xlu0.c.b16.start [1/8] %v257, 128
        %307 = vxpose.xlu0.c.b16.cont [2/8] 0, 128
        %308 = vxpose.xlu0.c.b16.cont [3/8] 0, 128
        %309 = vxpose.xlu0.c.b16.cont [4/8] 0, 128
        %310 = vxpose.xlu0.c.b16.cont [5/8] 0, 128
        %311 = vxpose.xlu0.c.b16.cont [6/8] 0, 128
        %312 = vxpose.xlu0.c.b16.cont [7/8] 0, 128
        %313 = vxpose.xlu0.c.b16.end [8/8] 0, 128
        %v314 = vpop.trf.xlu0
        %v315 = vpop.trf.xlu0
        %v316 = vpop.trf.xlu0
        %v317 = vpop.trf.xlu0
        %v318 = vpop.trf.xlu0
        %v319 = vpop.trf.xlu0
        %v320 = vpop.trf.xlu0
        %v321 = vpop.trf.xlu0
        %v322 = vld [vmem:[#allocation5] sm:$0xf]
        %v323 = vld [vmem:[#allocation5 + $0x4] sm:$0xf]
        %v326 = vunpack.c.l.b16 %v322
        %v327 = vunpack.c.l.b16 %v323
        %v328 = vpack.c.b16 %v327, %v326
        %vm330 = vcmask 130048
        %v332 = vsel %vm330, %v266, 0
        %v335 = vsel %vm330, %v282, 0
        %v338 = vsel %vm330, %v298, 0
        %v341 = vsel %vm330, %v314, 0
        %343 = vmatpush.bf16.msra.mxu0 0
        %344 = vmatpush.bf16.msra.mxu0 0
        %345 = vmatpush.bf16.msra.mxu0 0
        %346 = vmatpush.bf16.msra.mxu0 0
        %347 = vmatpush.bf16.msra.mxu0 0
        %348 = vmatpush.bf16.msra.mxu0 0
        %349 = vmatpush.bf16.msra.mxu0 0
        %350 = vmatpush.bf16.msra.mxu0 %v328
        %351 = vmatmul.bf16.gmra.mxu0 %v332
        %v352 = vpop.f32.mrf.mxu0
        %v353 = vadd.f32 0.0, %v352
        %v354 = vpop.f32.mrf.mxu0
        %v355 = vadd.f32 0.0, %v354
        %356 = vmatmul.bf16.gmra.mxu0 %v335
        %v357 = vpop.f32.mrf.mxu0
        %v358 = vadd.f32 0.0, %v357
        %v359 = vpop.f32.mrf.mxu0
        %v360 = vadd.f32 0.0, %v359
        %361 = vmatmul.bf16.gmra.mxu0 %v338
        %v362 = vpop.f32.mrf.mxu0
        %v363 = vadd.f32 0.0, %v362
        %v364 = vpop.f32.mrf.mxu0
        %v365 = vadd.f32 0.0, %v364
        %366 = vmatmul.bf16.gmra.mxu0 %v341
        %v367 = vpop.f32.mrf.mxu0
        %v368 = vadd.f32 0.0, %v367
        %v369 = vpop.f32.mrf.mxu0
        %v370 = vadd.f32 0.0, %v369
        %371 = vdwg.mxu0
        %v372 = vpack.c.bf16 %v355, %v353
        %v373 = vpack.c.bf16 %v360, %v358
        %v374 = vpack.c.bf16 %v365, %v363
        %v375 = vpack.c.bf16 %v370, %v368
        %376 = vxpose.xlu0.c.b16.start [1/8] %v372, 128
        %377 = vxpose.xlu0.c.b16.cont [2/8] 0, 128
        %378 = vxpose.xlu0.c.b16.cont [3/8] 0, 128
        %379 = vxpose.xlu0.c.b16.cont [4/8] 0, 128
        %380 = vxpose.xlu0.c.b16.cont [5/8] 0, 128
        %381 = vxpose.xlu0.c.b16.cont [6/8] 0, 128
        %382 = vxpose.xlu0.c.b16.cont [7/8] 0, 128
        %383 = vxpose.xlu0.c.b16.end [8/8] 0, 128
        %v384 = vpop.trf.xlu0
        %v385 = vpop.trf.xlu0
        %v386 = vpop.trf.xlu0
        %v387 = vpop.trf.xlu0
        %v388 = vpop.trf.xlu0
        %v389 = vpop.trf.xlu0
        %v390 = vpop.trf.xlu0
        %v391 = vpop.trf.xlu0
        %392 = vxpose.xlu0.c.b16.start [1/8] %v373, 128
        %393 = vxpose.xlu0.c.b16.cont [2/8] 0, 128
        %394 = vxpose.xlu0.c.b16.cont [3/8] 0, 128
        %395 = vxpose.xlu0.c.b16.cont [4/8] 0, 128
        %396 = vxpose.xlu0.c.b16.cont [5/8] 0, 128
        %397 = vxpose.xlu0.c.b16.cont [6/8] 0, 128
        %398 = vxpose.xlu0.c.b16.cont [7/8] 0, 128
        %399 = vxpose.xlu0.c.b16.end [8/8] 0, 128
        %v400 = vpop.trf.xlu0
        %v401 = vpop.trf.xlu0
        %v402 = vpop.trf.xlu0
        %v403 = vpop.trf.xlu0
        %v404 = vpop.trf.xlu0
        %v405 = vpop.trf.xlu0
        %v406 = vpop.trf.xlu0
        %v407 = vpop.trf.xlu0
        %408 = vxpose.xlu0.c.b16.start [1/8] %v374, 128
        %409 = vxpose.xlu0.c.b16.cont [2/8] 0, 128
        %410 = vxpose.xlu0.c.b16.cont [3/8] 0, 128
        %411 = vxpose.xlu0.c.b16.cont [4/8] 0, 128
        %412 = vxpose.xlu0.c.b16.cont [5/8] 0, 128
        %413 = vxpose.xlu0.c.b16.cont [6/8] 0, 128
        %414 = vxpose.xlu0.c.b16.cont [7/8] 0, 128
        %415 = vxpose.xlu0.c.b16.end [8/8] 0, 128
        %v416 = vpop.trf.xlu0
        %v417 = vpop.trf.xlu0
        %v418 = vpop.trf.xlu0
        %v419 = vpop.trf.xlu0
        %v420 = vpop.trf.xlu0
        %v421 = vpop.trf.xlu0
        %v422 = vpop.trf.xlu0
        %v423 = vpop.trf.xlu0
        %424 = vxpose.xlu0.c.b16.start [1/8] %v375, 128
        %425 = vxpose.xlu0.c.b16.cont [2/8] 0, 128
        %426 = vxpose.xlu0.c.b16.cont [3/8] 0, 128
        %427 = vxpose.xlu0.c.b16.cont [4/8] 0, 128
        %428 = vxpose.xlu0.c.b16.cont [5/8] 0, 128
        %429 = vxpose.xlu0.c.b16.cont [6/8] 0, 128
        %430 = vxpose.xlu0.c.b16.cont [7/8] 0, 128
        %431 = vxpose.xlu0.c.b16.end [8/8] 0, 128
        %v432 = vpop.trf.xlu0
        %v433 = vpop.trf.xlu0
        %v434 = vpop.trf.xlu0
        %v435 = vpop.trf.xlu0
        %v436 = vpop.trf.xlu0
        %v437 = vpop.trf.xlu0
        %v438 = vpop.trf.xlu0
        %v439 = vpop.trf.xlu0
        %v440 = vld [vmem:[#allocation7] sm:$0xf]
        %v441 = vld [vmem:[#allocation7 + $0x4] sm:$0xf]
        %v444 = vunpack.c.l.b16 %v440
        %v445 = vunpack.c.l.b16 %v441
        %v446 = vpack.c.b16 %v445, %v444
        %v449 = vsel %vm330, %v384, 0
        %v452 = vsel %vm330, %v385, 0
        %v455 = vsel %vm330, %v400, 0
        %v458 = vsel %vm330, %v401, 0
        %v461 = vsel %vm330, %v416, 0
        %v464 = vsel %vm330, %v417, 0
        %v467 = vsel %vm330, %v432, 0
        %v470 = vsel %vm330, %v433, 0
        %472 = vmatpush.bf16.msra.mxu0 0
        %473 = vmatpush.bf16.msra.mxu0 0
        %474 = vmatpush.bf16.msra.mxu0 0
        %475 = vmatpush.bf16.msra.mxu0 0
        %476 = vmatpush.bf16.msra.mxu0 0
        %477 = vmatpush.bf16.msra.mxu0 0
        %478 = vmatpush.bf16.msra.mxu0 0
        %479 = vmatpush.bf16.msra.mxu0 %v446
        %480 = vmatmul.bf16.gmra.mxu0 %v449
        %v481 = vpop.f32.mrf.mxu0
        %v482 = vadd.f32 0.0, %v481
        %v483 = vpop.f32.mrf.mxu0
        %v484 = vadd.f32 0.0, %v483
        %485 = vmatmul.bf16.gmra.mxu0 %v452
        %v486 = vpop.f32.mrf.mxu0
        %v487 = vadd.f32 0.0, %v486
        %v488 = vpop.f32.mrf.mxu0
        %v489 = vadd.f32 0.0, %v488
        %490 = vmatmul.bf16.gmra.mxu0 %v455
        %v491 = vpop.f32.mrf.mxu0
        %v492 = vadd.f32 0.0, %v491
        %v493 = vpop.f32.mrf.mxu0
        %v494 = vadd.f32 0.0, %v493
        %495 = vmatmul.bf16.gmra.mxu0 %v458
        %v496 = vpop.f32.mrf.mxu0
        %v497 = vadd.f32 0.0, %v496
        %v498 = vpop.f32.mrf.mxu0
        %v499 = vadd.f32 0.0, %v498
        %500 = vmatmul.bf16.gmra.mxu0 %v461
        %v501 = vpop.f32.mrf.mxu0
        %v502 = vadd.f32 0.0, %v501
        %v503 = vpop.f32.mrf.mxu0
        %v504 = vadd.f32 0.0, %v503
        %505 = vmatmul.bf16.gmra.mxu0 %v464
        %v506 = vpop.f32.mrf.mxu0
        %v507 = vadd.f32 0.0, %v506
        %v508 = vpop.f32.mrf.mxu0
        %v509 = vadd.f32 0.0, %v508
        %510 = vmatmul.bf16.gmra.mxu0 %v467
        %v511 = vpop.f32.mrf.mxu0
        %v512 = vadd.f32 0.0, %v511
        %v513 = vpop.f32.mrf.mxu0
        %v514 = vadd.f32 0.0, %v513
        %515 = vmatmul.bf16.gmra.mxu0 %v470
        %v516 = vpop.f32.mrf.mxu0
        %v517 = vadd.f32 0.0, %v516
        %v518 = vpop.f32.mrf.mxu0
        %v519 = vadd.f32 0.0, %v518
        %520 = vdwg.mxu0
        %vm521 = vcmask 261120
        %522 = vst.msk [vmem:[%s242] sm:$0xff] %vm521, %v482
        %523 = vst.msk [vmem:[%s242 + $0x8] sm:$0xff] %vm521, %v484
        %524 = vst.msk [vmem:[%s242 + $0x10] sm:$0xff] %vm521, %v487
        %525 = vst.msk [vmem:[%s242 + $0x18] sm:$0xff] %vm521, %v489
        %526 = vst.msk [vmem:[%s242 + $0x20] sm:$0xff] %vm521, %v492
        %527 = vst.msk [vmem:[%s242 + $0x28] sm:$0xff] %vm521, %v494
        %528 = vst.msk [vmem:[%s242 + $0x30] sm:$0xff] %vm521, %v497
        %529 = vst.msk [vmem:[%s242 + $0x38] sm:$0xff] %vm521, %v499
        %530 = vst.msk [vmem:[%s242 + $0x40] sm:$0xff] %vm521, %v502
        %531 = vst.msk [vmem:[%s242 + $0x48] sm:$0xff] %vm521, %v504
        %532 = vst.msk [vmem:[%s242 + $0x50] sm:$0xff] %vm521, %v507
        %533 = vst.msk [vmem:[%s242 + $0x58] sm:$0xff] %vm521, %v509
        %534 = vst.msk [vmem:[%s242 + $0x60] sm:$0xff] %vm521, %v512
        %535 = vst.msk [vmem:[%s242 + $0x68] sm:$0xff] %vm521, %v514
        %536 = vst.msk [vmem:[%s242 + $0x70] sm:$0xff] %vm521, %v517
        %537 = vst.msk [vmem:[%s242 + $0x78] sm:$0xff] %vm521, %v519
        %s538 = sand.u32 %s113, 1
        %s539 = scalar_lea.sflag [#allocation4], %s538
        %s540 = sand.u32 %s113, 1
        %s541 = smul.addr %s540, 128
        %s542 = scalar_lea.vmem [#allocation8], %s541
        // Predicated region
        $region45: #{tpu_custom_call.1} parent=31 // pred_check
          %p543 = pneg %p123
        $region46: #{tpu_custom_call.1} parent=31 // pred_check_branch
          %545 = sbr.rel (%p543) target = $region48
        $region47: #{tpu_custom_call.1} parent=31 // pred_region
          %s546 = smul.u32 4, %s26
          %548 = vsyncadd %s539, 0
          %s549 = smul.addr %s546, 4
          %s550 = smul.addr %s25, 16
          %s551 = sadd.s32 %s549, %s550
          %s552 = smul.addr %s551, 8
          %s553 = scalar_lea.hbm %s3, %s552
          %s554 = sshll.u32 %s542, 4
          %s555 = int_to_ptr.vmem [resolvable:$true] %s554
          %s556 = sshll.u32 %s553, 4
          %s557 = int_to_ptr.hbm [resolvable:$true] %s556
          %562 = dma.vmem_to_hbm [thread:$0]  %s555, 2048, %s557, %s539, 128, 128, 8
        $region48: #{tpu_custom_call.1} parent=31 // pred_fallthru
          _
      $region32: #{tpu_custom_call.1} parent=5 // pred_fallthru
        _
      %p563 = scmp.le.s32.totalorder 2, %s16
      // Predicated region
      $region49: #{tpu_custom_call.1} parent=5 // pred_check
        %p564 = pneg %p563
      $region50: #{tpu_custom_call.1} parent=5 // pred_check_branch
        %566 = sbr.rel (%p564) target = $region52
      $region51: #{tpu_custom_call.1} parent=5 // pred_region
        %s567 = ssub.s32 %s16, 2
        // Predicated region
        $region53: #{tpu_custom_call.1} parent=51 // pred_check
          %p568 = pneg %p129
        $region54: #{tpu_custom_call.1} parent=51 // pred_check_branch
          %570 = sbr.rel (%p568) target = $region56
        $region55: #{tpu_custom_call.1} parent=51 // pred_region
          %s571 = sand.u32 %s114, 1
          %s572 = scalar_lea.sflag [#allocation4], %s571
          %s573 = sand.u32 %s114, 1
          %s574 = smul.addr %s573, 128
          %s575 = scalar_lea.vmem [#allocation8], %s574
          %577 = dma.done %s572, 2048
        $region56: #{tpu_custom_call.1} parent=51 // pred_fallthru
          _
      $region52: #{tpu_custom_call.1} parent=5 // pred_fallthru
        _
    $region6: #{tpu_custom_call.1} parent=1 // loop_footer
      %s20 = sadd.s32 1, %s16
    $region7: #{tpu_custom_call.1} parent=1 // loop_footer_branch
      %15 = sbr.rel target = $region3
    $region8: #{tpu_custom_call.1} parent=1 // loop_exit
      _
    %578 = vsyncpa [#allocation3], 1
    %s579 = scalar_lea.sflag [#allocation3], 1
    %580 = vsyncpa %s579, 1
    %581 = vsyncpa [#allocation6], 1
    %582 = vsyncpa [#allocation4], 1
    %s583 = scalar_lea.sflag [#allocation4], 1
    %584 = vsyncpa %s583, 1

</llo_original>
